<compile_context>
chip_gen: v7x
topology: tpu7x:2x2x1
jax: 0.10.0
libtpu: 0.0.40
codegen_flags: <defaults>
</compile_context>

<pallas_src>
import functools

import jax
import jax.numpy as jnp
from jax.experimental import pallas as pl
from jax.experimental.pallas import tpu as pltpu


def calc_a_weights(sampling_rate: int, fft_size: int) -> jnp.ndarray:
    f = jnp.linspace(0.0, sampling_rate / 2.0, fft_size // 2 + 1)
    return (12194.0 ** 2 * f ** 4) / (
        (f ** 2 + 20.6 ** 2)
        * jnp.sqrt((f ** 2 + 107.7 ** 2) * (f ** 2 + 737.9 ** 2))
        * (f ** 2 + 12194.0 ** 2)
    )


def _loss_kernel(x_ref, y_ref, o_ref, *, tile_rows, total_rows, needs_mask):
    # x_ref / y_ref: (tile_rows, D) tiles in VMEM.
    # o_ref: (1, D) per-block partial sum (lane-dense), summed in the wrapper.
    x = x_ref[...].astype(jnp.float32)
    y = y_ref[...].astype(jnp.float32)
    err = jnp.abs(jnp.log(y + 1.0) - jnp.log(x + 1.0))
    if needs_mask:
        # Zero out rows of the (padded) tail block that lie past the real data.
        row_start = pl.program_id(0) * tile_rows
        row_ids = jax.lax.broadcasted_iota(jnp.int32, err.shape, 0) + row_start
        err = jnp.where(row_ids < total_rows, err, 0.0)
    # Single sublane reduce per (large) block; cross-lane reduce happens once
    # in the wrapper over the tiny partials array.
    o_ref[...] = jnp.sum(err, axis=0, keepdims=True)


def a_weighted_log_stft_magnitude_loss(x_mag, y_mag, weight_scalar=1.0, *, tile_rows=None):
    """Equivalent to AWeightedLogSTFTMagnitudeLoss.forward(x_mag, y_mag, None)."""
    B, T, D = x_mag.shape
    assert y_mag.shape == (B, T, D)
    rows = B * T

    # Flatten to (rows, D): contiguous, free reshape; lane axis = freq bins.
    x2 = x_mag.reshape(rows, D)
    y2 = y_mag.reshape(rows, D)

    # Pick a tile ~2 MiB per input (sweet spot for HBM-bound elementwise work;
    # 2 inputs x 2 pipeline buffers ~ 8 MiB, safe on v5e/v6e/v7x VMEM budgets).
    if tile_rows is None:
        target_bytes = 2 * 1024 * 1024
        tile_rows = max(8, (target_bytes // (D * 4)) // 8 * 8)
    else:
        tile_rows = max(8, (int(tile_rows) // 8) * 8)
    if tile_rows >= rows:
        tile_rows = rows  # single full-extent block (allowed even if rows % 8 != 0)

    num_blocks = -(-rows // tile_rows)  # ceil div (python int for out_shape)
    needs_mask = (rows % tile_rows) != 0

    kernel = functools.partial(
        _loss_kernel,
        tile_rows=tile_rows,
        total_rows=rows,
        needs_mask=needs_mask,
    )

    in_block = pl.BlockSpec((tile_rows, D), lambda i: (i, 0))
    partials = pl.pallas_call(
        kernel,
        out_shape=jax.ShapeDtypeStruct((num_blocks, D), jnp.float32),
        grid_spec=pltpu.PrefetchScalarGridSpec(
            num_scalar_prefetch=0,
            grid=(num_blocks,),
            in_specs=[in_block, in_block],
            out_specs=pl.BlockSpec((1, D), lambda i: (i, 0)),
        ),
        compiler_params=pltpu.CompilerParams(
            dimension_semantics=("parallel",),
            vmem_limit_bytes=32 * 1024 * 1024,
        ),
    )(x2, y2)

    total = jnp.sum(partials, dtype=jnp.float32)
    # Weight is a scalar (the module overwrites self.weights with 1.0); fold it
    # into the final mean.
    return jnp.float32(weight_scalar) * total / jnp.float32(B * T * D)


if __name__ == "__main__":
    # Deterministic parameter setup (mirrors __init__; weights end up = 1.0).
    sampling_rate, fft_size = 22050, 1024
    a_weights = calc_a_weights(sampling_rate, fft_size) + 1e-6  # computed for parity
    weight_scalar = 1.0  # the module overwrites self.weights with the scalar 1.0

    key = jax.random.PRNGKey(0)
    kx, ky = jax.random.split(key)
    B, T, D = 2, 16, 128  # (batch, #frames, #freq_bins) — small demo shape
    # Magnitude spectrograms are non-negative.
    x_mag = jnp.abs(jax.random.normal(kx, (B, T, D), dtype=jnp.float32))
    y_mag = jnp.abs(jax.random.normal(ky, (B, T, D), dtype=jnp.float32))

    loss = a_weighted_log_stft_magnitude_loss(x_mag, y_mag, weight_scalar)
    jax.block_until_ready(loss)
    ref = jnp.mean(jnp.abs(jnp.log(y_mag + 1.0) - jnp.log(x_mag + 1.0)))
    assert jnp.allclose(loss, ref, rtol=1e-5, atol=1e-6), (loss, ref)

    # Second check: non-divisible row count, non-multiple-of-128 freq bins,
    # forced small tile — exercises the cdiv grid + tail-block masking path.
    B2, T2, D2 = 2, 23, 96
    kx2, ky2 = jax.random.split(jax.random.PRNGKey(1))
    x2 = jnp.abs(jax.random.normal(kx2, (B2, T2, D2), dtype=jnp.float32))
    y2 = jnp.abs(jax.random.normal(ky2, (B2, T2, D2), dtype=jnp.float32))
    loss2 = a_weighted_log_stft_magnitude_loss(x2, y2, weight_scalar, tile_rows=16)
    jax.block_until_ready(loss2)
    ref2 = jnp.mean(jnp.abs(jnp.log(y2 + 1.0) - jnp.log(x2 + 1.0)))
    assert jnp.allclose(loss2, ref2, rtol=1e-5, atol=1e-6), (loss2, ref2)

    print("KERNEL_OK")
</pallas_src>

<mosaic_0001>
module attributes {stable_mosaic.version = 11 : i64} {
  func.func @_loss_kernel(%arg0: i32, %arg1: memref<32x128xf32, #tpu.memory_space<vmem>>, %arg2: memref<32x128xf32, #tpu.memory_space<vmem>>, %arg3: memref<1x128xf32, #tpu.memory_space<vmem>>) attributes {dimension_semantics = [#tpu.dimension_semantics<parallel>], iteration_bounds = array<i64: 1>, scalar_prefetch = 0 : i64, scratch_operands = 0 : i64, tpu.core_type = #tpu.core_type<tc>, window_params = [{transform_indices = @transform_0, window_bounds = array<i64: 32, 128>}, {transform_indices = @transform_1, window_bounds = array<i64: 32, 128>}, {transform_indices = @transform_2, window_bounds = array<i64: 1, 128>}]} {
    %c0 = arith.constant 0 : index
    %c0_0 = arith.constant 0 : index
    %0 = vector.load %arg1[%c0, %c0_0] : memref<32x128xf32, #tpu.memory_space<vmem>>, vector<32x128xf32>
    %c0_1 = arith.constant 0 : index
    %c0_2 = arith.constant 0 : index
    %1 = vector.load %arg2[%c0_1, %c0_2] : memref<32x128xf32, #tpu.memory_space<vmem>>, vector<32x128xf32>
    %cst = arith.constant 1.000000e+00 : f32
    %2 = vector.broadcast %cst : f32 to vector<32x128xf32>
    %3 = arith.addf %1, %2 : vector<32x128xf32>
    %4 = math.log %3 : vector<32x128xf32>
    %cst_3 = arith.constant 1.000000e+00 : f32
    %5 = vector.broadcast %cst_3 : f32 to vector<32x128xf32>
    %6 = arith.addf %0, %5 : vector<32x128xf32>
    %7 = math.log %6 : vector<32x128xf32>
    %8 = arith.subf %4, %7 : vector<32x128xf32>
    %9 = math.absf %8 : vector<32x128xf32>
    %cst_4 = arith.constant dense<0.000000e+00> : vector<128xf32>
    %10 = vector.multi_reduction <add>, %9, %cst_4 [0] : vector<32x128xf32> to vector<128xf32>
    %11 = vector.shape_cast %10 : vector<128xf32> to vector<1x128xf32>
    %c0_5 = arith.constant 0 : index
    %c0_6 = arith.constant 0 : index
    %12 = vector.load %arg3[%c0_5, %c0_6] : memref<1x128xf32, #tpu.memory_space<vmem>>, vector<1x128xf32>
    tpu.vector_store %arg3[%c0_5, %c0_6], %11 {strides = array<i32>} : memref<1x128xf32, #tpu.memory_space<vmem>>, vector<1x128xf32>,
    return
  }
  func.func @transform_0(%arg0: i32) -> (i32, i32) {
    %c0_i32 = arith.constant 0 : i32
    %c0_i32_0 = arith.constant 0 : i32
    return %arg0, %c0_i32 : i32, i32
  }
  func.func @transform_1(%arg0: i32) -> (i32, i32) {
    %c0_i32 = arith.constant 0 : i32
    %c0_i32_0 = arith.constant 0 : i32
    return %arg0, %c0_i32 : i32, i32
  }
  func.func @transform_2(%arg0: i32) -> (i32, i32) {
    %c0_i32 = arith.constant 0 : i32
    %c0_i32_0 = arith.constant 0 : i32
    return %arg0, %c0_i32 : i32, i32
  }
}

</mosaic_0001>

<llo_original>
// kernel: tpu_custom_call.1
$region0: #{tpu_custom_call.1}
  #allocation0 [shape = 'u32[]', space=smem, size = 0x4, offset = 0x4, fixed_abs, tag = 'smem constant byte address 0x4 - core index']
  #allocation1 [shape = 'u32[144,128]{1,0:T(1,128)}', space=vmem, size = 0x12000, scoped, tag = 'internal scratch']
  %s0 = inlined_call_operand.hbm [shape: f32[32,128], index: 0, kind: input, shape index: {}]
  %s1 = inlined_call_operand.hbm [shape: f32[32,128], index: 1, kind: input, shape index: {}]
  %s2 = inlined_call_operand.hbm [shape: f32[1,128], index: 2, kind: output, shape index: {}]
  %s3 = sld [smem:[#allocation0]]
  $region26: #{tpu_custom_call.1} parent=0
    _
  %s5 = ssub.s32 1, %s3
  %s6 = scalar_select 0, %s5, %s3
  $region1: #{tpu_custom_call.1} parent=0
    #allocation2 [shape = 'u8[16384]{0}', space=vmem, size = 0x4000, scoped, tag = 'input window, operand 0, single buffered']
    #allocation3 [shape = 's32[1]{0}', space=sflag, size = 0x4, scoped, tag = 'scoped memory for tpu_custom_call.1']
    #allocation4 [shape = 's32[1]{0}', space=sflag, size = 0x4, scoped, tag = 'scoped memory for tpu_custom_call.1']
    #allocation5 [shape = 'u8[16384]{0}', space=vmem, size = 0x4000, scoped, tag = 'input window, operand 1, single buffered']
    #allocation6 [shape = 's32[1]{0}', space=sflag, size = 0x4, scoped, tag = 'scoped memory for tpu_custom_call.1']
    #allocation7 [shape = 'u8[512]{0}', space=vmem, size = 0x400, scoped, tag = 'output window, operand 0, single buffered']
    %7 = vsyncpa [#allocation3], 0
    %8 = vsyncpa [#allocation6], 0
    %9 = vsyncpa [#allocation4], 0
    // Predicated region
    $region2: #{tpu_custom_call.1} parent=1 // pred_check
      _
    $region3: #{tpu_custom_call.1} parent=1 // pred_check_branch
      %11 = sbr.rel (0) target = $region5
    $region4: #{tpu_custom_call.1} parent=1 // pred_region
      %s13 = ssub.s32 512, 512
      %14 = vsyncadd [#allocation3], %s13
      %s15 = sshll.u32 [#allocation2], 4
      %s16 = int_to_ptr.vmem [resolvable:$true] %s15
      %21 = dma.hbm_to_vmem [thread:$0]  %s0, 512, %s16, [#allocation3], 128, 128, 8
    $region5: #{tpu_custom_call.1} parent=1 // pred_fallthru
      _
    // Predicated region
    $region6: #{tpu_custom_call.1} parent=1 // pred_check
      _
    $region7: #{tpu_custom_call.1} parent=1 // pred_check_branch
      %23 = sbr.rel (0) target = $region9
    $region8: #{tpu_custom_call.1} parent=1 // pred_region
      %s25 = ssub.s32 512, 512
      %26 = vsyncadd [#allocation6], %s25
      %s27 = sshll.u32 [#allocation5], 4
      %s28 = int_to_ptr.vmem [resolvable:$true] %s27
      %33 = dma.hbm_to_vmem [thread:$0]  %s1, 512, %s28, [#allocation6], 128, 128, 8
    $region9: #{tpu_custom_call.1} parent=1 // pred_fallthru
      _
    // Predicated region
    $region10: #{tpu_custom_call.1} parent=1 // pred_check
      _
    $region11: #{tpu_custom_call.1} parent=1 // pred_check_branch
      %35 = sbr.rel (0) target = $region13
    $region12: #{tpu_custom_call.1} parent=1 // pred_region
      %36 = dma.done [#allocation3], 512
    $region13: #{tpu_custom_call.1} parent=1 // pred_fallthru
      _
    // Predicated region
    $region14: #{tpu_custom_call.1} parent=1 // pred_check
      _
    $region15: #{tpu_custom_call.1} parent=1 // pred_check_branch
      %38 = sbr.rel (0) target = $region17
    $region16: #{tpu_custom_call.1} parent=1 // pred_region
      %39 = dma.done [#allocation6], 512
    $region17: #{tpu_custom_call.1} parent=1 // pred_fallthru
      _
    %v40 = vld [vmem:[#allocation2] sm:$0xff]
    %v41 = vld [vmem:[#allocation2 + $0x8] sm:$0xff]
    %v42 = vld [vmem:[#allocation2 + $0x10] sm:$0xff]
    %v43 = vld [vmem:[#allocation2 + $0x18] sm:$0xff]
    %v44 = vld [vmem:[#allocation5] sm:$0xff]
    %v45 = vld [vmem:[#allocation5 + $0x8] sm:$0xff]
    %v46 = vld [vmem:[#allocation5 + $0x10] sm:$0xff]
    %v47 = vld [vmem:[#allocation5 + $0x18] sm:$0xff]
    %v48 = vadd.f32 %v44, 1.0
    %v49 = vadd.f32 %v45, 1.0
    %v50 = vadd.f32 %v46, 1.0
    %v51 = vadd.f32 %v47, 1.0
    %v52 = vlog2.pop %v48
    %v53 = vmul.f32 %v52, 0.6931472
    %v54 = vlog2.pop %v49
    %v55 = vmul.f32 %v54, 0.6931472
    %v56 = vlog2.pop %v50
    %v57 = vmul.f32 %v56, 0.6931472
    %v58 = vlog2.pop %v51
    %v59 = vmul.f32 %v58, 0.6931472
    %v60 = vadd.f32 %v40, 1.0
    %v61 = vadd.f32 %v41, 1.0
    %v62 = vadd.f32 %v42, 1.0
    %v63 = vadd.f32 %v43, 1.0
    %v64 = vlog2.pop %v60
    %v65 = vmul.f32 %v64, 0.6931472
    %v66 = vlog2.pop %v61
    %v67 = vmul.f32 %v66, 0.6931472
    %v68 = vlog2.pop %v62
    %v69 = vmul.f32 %v68, 0.6931472
    %v70 = vlog2.pop %v63
    %v71 = vmul.f32 %v70, 0.6931472
    %v72 = vsub.f32 %v53, %v65
    %v73 = vsub.f32 %v55, %v67
    %v74 = vsub.f32 %v57, %v69
    %v75 = vsub.f32 %v59, %v71
    %v76 = vand.u32 2147483647, %v72
    %v77 = vand.u32 2147483647, %v73
    %v78 = vand.u32 2147483647, %v74
    %v79 = vand.u32 2147483647, %v75
    %v80 = vadd.f32 %v76, %v77
    %v81 = vadd.f32 %v80, %v78
    %v82 = vadd.f32 %v81, %v79
    %v83 = vrot.slane %v82, 4
    %v84 = vadd.f32 %v82, %v83
    %v85 = vrot.slane %v84, 2
    %v86 = vadd.f32 %v84, %v85
    %v87 = vrot.slane %v86, 1
    %v88 = vadd.f32 %v86, %v87
    %89 = vst [vmem:[#allocation7] sm:$0x1] %v88
    // Predicated region
    $region18: #{tpu_custom_call.1} parent=1 // pred_check
      _
    $region19: #{tpu_custom_call.1} parent=1 // pred_check_branch
      %91 = sbr.rel (0) target = $region21
    $region20: #{tpu_custom_call.1} parent=1 // pred_region
      %s93 = ssub.s32 16, 16
      %94 = vsyncadd [#allocation4], %s93
      %s96 = sshll.u32 [#allocation7], 4
      %s97 = int_to_ptr.vmem [resolvable:$true] %s96
      %99 = dma.vmem_to_hbm [thread:$0]  %s97, 16, %s2, [#allocation4]
    $region21: #{tpu_custom_call.1} parent=1 // pred_fallthru
      _
    // Predicated region
    $region22: #{tpu_custom_call.1} parent=1 // pred_check
      _
    $region23: #{tpu_custom_call.1} parent=1 // pred_check_branch
      %101 = sbr.rel (0) target = $region25
    $region24: #{tpu_custom_call.1} parent=1 // pred_region
      %102 = dma.done [#allocation4], 16
    $region25: #{tpu_custom_call.1} parent=1 // pred_fallthru
      _
    %103 = vsyncpa [#allocation3], 1
    %104 = vsyncpa [#allocation6], 1
    %105 = vsyncpa [#allocation4], 1

</llo_original>
